<compile_context>
chip_gen: v7x
topology: tpu7x:2x2x1
jax: 0.10.0
libtpu: 0.0.40
codegen_flags: <defaults>
</compile_context>

<pallas_src>
import functools

import jax
import jax.numpy as jnp
import numpy as np
from jax import lax
from jax.experimental import pallas as pl
from jax.experimental.pallas import tpu as pltpu


# ----------------------------------------------------------------------------
# Packed constant buffer (weights + biases + masks + batch-segment matrix)
# ----------------------------------------------------------------------------
def _round_up(n, m):
    return ((n + m - 1) // m) * m


def _pack_offsets(classes, k, s, d, bt, hw):
    """Row/col offsets of each section inside the packed constant buffer."""
    cin = classes
    ss = s * s
    cout = 2 * ss * classes
    npre = classes * ss
    kkcin = k * k * cin
    L = bt * hw
    offs = {}
    r = 0
    for name, rows in (('wc', cout), ('w1', d), ('b1', d), ('w2', cout),
                       ('b2', cout), ('wf2', npre), ('bf', npre),
                       ('seg', bt), ('mk', kkcin)):
        offs[name] = r
        r = _round_up(r + rows, 8)          # keep every section sublane-aligned
    offs['rows'] = r
    offs['cols'] = _round_up(max(128, kkcin, cout, d, npre, L), 128)
    return offs


def build_weight_pack(tp, *, classes, k, s, h, w, bt):
    ss = s * s
    cin = classes
    cout = 2 * ss * classes
    npre = classes * ss
    kkcin = k * k * cin
    hw = h * w
    L = bt * hw
    d = tp['w1'].shape[0]
    pad = (k - 1) // 2
    offs = _pack_offsets(classes, k, s, d, bt, hw)
    pack = np.zeros((offs['rows'], offs['cols']), np.float32)

    # k x k conv weight as a lane-aligned (cout, >=128) slab, tap-major:
    # column t*cin + ci holds w_filter[:, ci, dy, dx] for tap t = dy*k + dx.
    # Columns kkcin.. stay zero, matching the zero-padded im2col contraction.
    w_filter = np.asarray(tp['w_filter'], np.float32)          # (cout,cin,k,k)
    pack[offs['wc']:offs['wc'] + cout, :kkcin] = (
        w_filter.transpose(0, 2, 3, 1).reshape(cout, kkcin))

    # Pooling-group matrix: G0[c2, oc] = 1 iff oc // ss == c2 (post-shuffle
    # channel c2 averages the ss pre-shuffle channels of its group).
    G0 = np.repeat(np.eye(2 * classes, dtype=np.float32), ss, axis=1)

    W1 = np.asarray(tp['w1'], np.float32).reshape(d, 2 * classes)
    W2 = np.asarray(tp['w2'], np.float32).reshape(2 * classes, d)
    # Fold global-average-pool (group sum * 1/(H_out*W_out)) into conv #1.
    pack[offs['w1']:offs['w1'] + d, :cout] = (W1 @ G0) / float(hw * ss)
    pack[offs['b1']:offs['b1'] + d, 0] = np.asarray(tp['b1'], np.float32)
    # Fold the per-group broadcast (0/1 row selection, commutes with sigmoid)
    # into conv #2.
    pack[offs['w2']:offs['w2'] + cout, :d] = G0.T @ W2
    pack[offs['b2']:offs['b2'] + cout, 0] = G0.T @ np.asarray(tp['b2'],
                                                              np.float32)

    # Final 1x1 conv with the pixel-shuffle structure AND the up/match branch
    # combine folded in: wf2 = [kron(wf, I_ss) | kron(wf, I_ss)]  (npre, cout).
    wf = np.asarray(tp['wf'], np.float32).reshape(classes, classes)
    wk = np.kron(wf, np.eye(ss, dtype=np.float32))             # (npre, npre)
    pack[offs['wf2']:offs['wf2'] + npre, :cout] = np.concatenate([wk, wk], 1)
    pack[offs['bf']:offs['bf'] + npre, 0] = np.repeat(
        np.asarray(tp['bf'], np.float32), ss)

    # Batch-segment indicator (bt, bt*hw): lane l belongs to batch l // hw.
    for b in range(bt):
        pack[offs['seg'] + b, b * hw:(b + 1) * hw] = 1.0

    # Border-validity masks, pre-replicated to cin rows per tap and tiled over
    # the bt batch segments -> ONE (kkcin, L) elementwise multiply in-kernel.
    # These masks also zero exactly the lanes where the flattened lane-roll
    # would leak across a batch seam (or wrap around the array ends).
    ys = np.arange(h)[:, None]
    xs = np.arange(w)[None, :]
    t = 0
    for dy in range(k):
        oy = dy - pad
        for dx in range(k):
            ox = dx - pad
            valid = ((ys + oy >= 0) & (ys + oy < h) &
                     (xs + ox >= 0) & (xs + ox < w))
            row = np.tile(valid.reshape(hw).astype(np.float32), bt)   # (L,)
            pack[offs['mk'] + t * cin:offs['mk'] + (t + 1) * cin, :L] = row
            t += 1

    return jnp.asarray(pack), offs


# ----------------------------------------------------------------------------
# Fused kernel: im2col conv -> attention -> combine+final 1x1 (pre-shuffle)
# ----------------------------------------------------------------------------
def _pce_fused_kernel(x_ref, wpk_ref, o_ref, *, h, w, k, s, classes, d, bt,
                      offs):
    cin = classes
    ss = s * s
    cout = 2 * ss * classes
    npre = classes * ss
    hw = h * w
    L = bt * hw
    kkcin = k * k * cin
    kpad = _round_up(kkcin, 128)       # MXU-native contraction width
    pad = (k - 1) // 2

    x = x_ref[...].astype(jnp.float32)                         # (cin, L)

    # --- im2col: stack the k*k shifted taps along sublanes -----------------
    # Halo shifts are XLU lane rotations; out-of-image / cross-batch-seam
    # lanes are all zeroed by ONE pre-replicated mask multiply.
    taps = []
    for dy in range(k):
        for dx in range(k):
            delta = (dy - pad) * w + (dx - pad)
            if delta == 0:
                taps.append(x)                                 # center tap
            else:
                taps.append(pltpu.roll(x, (-delta) % L, axis=1))
    taps = jnp.concatenate(taps, axis=0)                       # (kkcin, L)
    mask = wpk_ref[offs['mk']:offs['mk'] + kkcin, 0:L]
    taps = taps * mask
    if kpad > kkcin:                                           # pad K -> 128
        taps = jnp.concatenate(
            [taps, jnp.zeros((kpad - kkcin, L), jnp.float32)], axis=0)

    # --- single im2col conv matmul (bf16 operands, f32 accumulation) -------
    wc = wpk_ref[offs['wc']:offs['wc'] + cout, 0:kpad]         # (cout, 128)
    y = jnp.dot(wc.astype(jnp.bfloat16), taps.astype(jnp.bfloat16),
                preferred_element_type=jnp.float32)            # (cout, L)

    # --- channel attention (pool + group matrices folded into weights) -----
    seg = wpk_ref[offs['seg']:offs['seg'] + bt, 0:L]           # (bt, L) 0/1
    pooled = jnp.einsum('cl,bl->cb', y, seg,
                        preferred_element_type=jnp.float32)    # (cout, bt)
    w1 = wpk_ref[offs['w1']:offs['w1'] + d, 0:cout]            # (d, cout)
    b1 = wpk_ref[offs['b1']:offs['b1'] + d, 0:1]               # (d, 1)
    h1 = jnp.maximum(
        jnp.dot(w1, pooled, preferred_element_type=jnp.float32) + b1, 0.0)
    w2 = wpk_ref[offs['w2']:offs['w2'] + cout, 0:d]            # (cout, d)
    b2 = wpk_ref[offs['b2']:offs['b2'] + cout, 0:1]            # (cout, 1)
    scale = jax.nn.sigmoid(
        jnp.dot(w2, h1, preferred_element_type=jnp.float32) + b2)  # (cout, bt)

    # Broadcast each batch's attention column across its hw lanes with a tiny
    # matmul against the 0/1 segment matrix (no sublane-broadcast relayouts).
    scale_full = jnp.dot(scale, seg,
                         preferred_element_type=jnp.float32)   # (cout, L)

    # --- branch combine + final 1x1 conv folded into ONE matmul ------------
    z = y * scale_full                                         # f32 VPU
    wf2 = wpk_ref[offs['wf2']:offs['wf2'] + npre, 0:cout]      # [kron|kron]
    bf = wpk_ref[offs['bf']:offs['bf'] + npre, 0:1]
    out = jnp.dot(wf2.astype(jnp.bfloat16), z.astype(jnp.bfloat16),
                  preferred_element_type=jnp.float32) + bf     # (npre, L)
    o_ref[...] = out.astype(o_ref.dtype)                       # lane-dense


def pce_fused(x_cl, wpack, *, offs, h, w, k, s, classes, d, bt):
    cin, BL = x_cl.shape
    hw = h * w
    L = bt * hw
    assert BL % L == 0
    npre = classes * s * s
    kernel = functools.partial(_pce_fused_kernel, h=h, w=w, k=k, s=s,
                               classes=classes, d=d, bt=bt, offs=offs)
    return pl.pallas_call(
        kernel,
        out_shape=jax.ShapeDtypeStruct((npre, BL), x_cl.dtype),
        grid=(BL // L,),
        in_specs=[
            pl.BlockSpec((cin, L), lambda i: (0, i)),
            # Constant pack: same block every step.  At grid=(1,) it is never
            # double-buffered; for longer grids pl.Buffered(1) would save one
            # VMEM copy (left default here for portability).
            pl.BlockSpec((offs['rows'], offs['cols']), lambda i: (0, 0)),
        ],
        out_specs=pl.BlockSpec((npre, L), lambda i: (0, i)),
        compiler_params=pltpu.CompilerParams(
            dimension_semantics=("parallel",)),
    )(x_cl, wpack)


# ----------------------------------------------------------------------------
# Forward wrapper (layout glue only)
# ----------------------------------------------------------------------------
def pce_forward(x_nchw, wpack, *, offs, k, s, classes, d, bt):
    assert k % 2 == 1, "stride-1 'same' conv assumes odd kernel size"
    B, C, h, w = x_nchw.shape
    assert B % bt == 0
    hw = h * w
    npre = classes * s * s
    # Pack batch onto the lane axis: (cin, B*hw) with batch-major segments.
    x_cl = x_nchw.transpose(1, 0, 2, 3).reshape(C, B * hw)
    out_pre = pce_fused(x_cl, wpack, offs=offs, h=h, w=w, k=k, s=s,
                        classes=classes, d=d, bt=bt)           # (npre, B*hw)
    # Un-pack batch + pixel shuffle of the fully-computed output: pure layout.
    out = (out_pre.reshape(classes, s, s, B, h, w)
                  .transpose(3, 0, 4, 1, 5, 2)
                  .reshape(B, classes, h * s, w * s))          # NCHW
    return out


# ----------------------------------------------------------------------------
# Deterministic parameter init (torch layouts) + pure-JAX reference
# ----------------------------------------------------------------------------
def init_torch_params(key, classes, k, s):
    gps, dim = 2, 64
    d = dim // 16
    ks = jax.random.split(key, 7)
    scale = 0.1
    return dict(
        w_filter=scale * jax.random.normal(
            ks[0], (2 * s * s * classes, classes, k, k), jnp.float32),
        w1=scale * jax.random.normal(ks[1], (d, gps * classes, 1, 1),
                                     jnp.float32),
        b1=scale * jax.random.normal(ks[2], (d,), jnp.float32),
        w2=scale * jax.random.normal(ks[3], (gps * classes, d, 1, 1),
                                     jnp.float32),
        b2=scale * jax.random.normal(ks[4], (gps * classes,), jnp.float32),
        wf=scale * jax.random.normal(ks[5], (classes, classes, 1, 1),
                                     jnp.float32),
        bf=scale * jax.random.normal(ks[6], (classes,), jnp.float32),
    )


def pce_reference(x, tp, *, k, s, classes):
    """Pure-JAX NCHW reference mirroring the PyTorch forward."""
    p = (k - 1) // 2
    y = lax.conv_general_dilated(x, tp['w_filter'], (1, 1),
                                 [(p, p), (p, p)],
                                 dimension_numbers=('NCHW', 'OIHW', 'NCHW'))
    B, OC, hh, ww = y.shape
    Cps = OC // (s * s)
    ps = (y.reshape(B, Cps, s, s, hh, ww)
            .transpose(0, 1, 4, 2, 5, 3)
            .reshape(B, Cps, hh * s, ww * s))
    up, mt = ps[:, :classes], ps[:, classes:]
    pooled = jnp.mean(jnp.concatenate([up, mt], axis=1), axis=(2, 3))  # (B,2C)
    d = tp['w1'].shape[0]
    h1 = jax.nn.relu(pooled @ tp['w1'].reshape(d, 2 * classes).T + tp['b1'])
    att = jax.nn.sigmoid(h1 @ tp['w2'].reshape(2 * classes, d).T + tp['b2'])
    att = att.reshape(B, 2, classes)
    final = (att[:, 0][:, :, None, None] * up
             + att[:, 1][:, :, None, None] * mt)
    out = jnp.einsum('bchw,oc->bohw', final, tp['wf'].reshape(classes, classes))
    return out + tp['bf'][None, :, None, None]


if __name__ == "__main__":
    classes, k, s = 4, 3, 2
    B, h, w = 2, 16, 16
    bt = B      # whole batch packed into one grid step (best on v5e/v6e).
                # On v7x, set bt = B // 2 so each TensorCore gets a grid step.

    key = jax.random.PRNGKey(0)
    kx, kp = jax.random.split(key)
    x = jax.random.normal(kx, (B, classes, h, w), jnp.float32)

    torch_params = init_torch_params(kp, classes, k, s)
    pack, offs = build_weight_pack(torch_params, classes=classes, k=k, s=s,
                                   h=h, w=w, bt=bt)
    d = torch_params['w1'].shape[0]

    fwd = jax.jit(functools.partial(pce_forward, offs=offs, k=k, s=s,
                                    classes=classes, d=d, bt=bt))
    out = jax.block_until_ready(fwd(x, pack))

    ref = jax.block_until_ready(
        pce_reference(x, torch_params, k=k, s=s, classes=classes))

    assert out.shape == (B, classes, h * s, w * s), out.shape
    # bf16 MXU operands (f32 accumulation) -> slightly looser tolerance.
    np.testing.assert_allclose(np.asarray(out), np.asarray(ref),
                               rtol=1e-2, atol=1e-2)
    print("KERNEL_OK")
</pallas_src>

<mosaic_0001>
module attributes {stable_mosaic.version = 11 : i64} {
  func.func @_pce_fused_kernel(%arg0: i32, %arg1: memref<4x512xf32, #tpu.memory_space<vmem>>, %arg2: memref<192x512xf32, #tpu.memory_space<vmem>>, %arg3: memref<16x512xf32, #tpu.memory_space<vmem>>) attributes {dimension_semantics = [#tpu.dimension_semantics<parallel>], iteration_bounds = array<i64: 1>, scalar_prefetch = 0 : i64, scratch_operands = 0 : i64, tpu.core_type = #tpu.core_type<tc>, window_params = [{transform_indices = @transform_0, window_bounds = array<i64: 4, 512>}, {pipeline_mode = #tpu.pipeline_mode<synchronous>, transform_indices = @transform_1, window_bounds = array<i64: 192, 512>}, {transform_indices = @transform_2, window_bounds = array<i64: 16, 512>}]} {
    %c0 = arith.constant 0 : index
    %c0_0 = arith.constant 0 : index
    %0 = vector.load %arg1[%c0, %c0_0] : memref<4x512xf32, #tpu.memory_space<vmem>>, vector<4x512xf32>
    %c17_i32 = arith.constant 17 : i32
    %1 = tpu.dynamic_rotate %0 by %c17_i32 dim 1 : vector<4x512xf32>, i32 -> vector<4x512xf32>
    %c16_i32 = arith.constant 16 : i32
    %2 = tpu.dynamic_rotate %0 by %c16_i32 dim 1 : vector<4x512xf32>, i32 -> vector<4x512xf32>
    %c15_i32 = arith.constant 15 : i32
    %3 = tpu.dynamic_rotate %0 by %c15_i32 dim 1 : vector<4x512xf32>, i32 -> vector<4x512xf32>
    %c1_i32 = arith.constant 1 : i32
    %4 = tpu.dynamic_rotate %0 by %c1_i32 dim 1 : vector<4x512xf32>, i32 -> vector<4x512xf32>
    %c511_i32 = arith.constant 511 : i32
    %5 = tpu.dynamic_rotate %0 by %c511_i32 dim 1 : vector<4x512xf32>, i32 -> vector<4x512xf32>
    %c497_i32 = arith.constant 497 : i32
    %6 = tpu.dynamic_rotate %0 by %c497_i32 dim 1 : vector<4x512xf32>, i32 -> vector<4x512xf32>
    %c496_i32 = arith.constant 496 : i32
    %7 = tpu.dynamic_rotate %0 by %c496_i32 dim 1 : vector<4x512xf32>, i32 -> vector<4x512xf32>
    %c495_i32 = arith.constant 495 : i32
    %8 = tpu.dynamic_rotate %0 by %c495_i32 dim 1 : vector<4x512xf32>, i32 -> vector<4x512xf32>
    %9 = tpu.concatenate %1, %2, %3, %4, %0, %5, %6, %7, %8 in 0 : vector<4x512xf32>, vector<4x512xf32>, vector<4x512xf32>, vector<4x512xf32>, vector<4x512xf32>, vector<4x512xf32>, vector<4x512xf32>, vector<4x512xf32>, vector<4x512xf32> -> vector<36x512xf32>
    %c152 = arith.constant 152 : index
    %c0_1 = arith.constant 0 : index
    %10 = vector.load %arg2[%c152, %c0_1] : memref<192x512xf32, #tpu.memory_space<vmem>>, vector<36x512xf32>
    %11 = arith.mulf %9, %10 : vector<36x512xf32>
    %cst = arith.constant 0.000000e+00 : f32
    %12 = vector.broadcast %cst : f32 to vector<92x512xf32>
    %13 = tpu.concatenate %11, %12 in 0 : vector<36x512xf32>, vector<92x512xf32> -> vector<128x512xf32>
    %c0_2 = arith.constant 0 : index
    %c0_3 = arith.constant 0 : index
    %14 = vector.load %arg2[%c0_2, %c0_3] : memref<192x512xf32, #tpu.memory_space<vmem>>, vector<32x128xf32>
    %15 = arith.truncf %14 : vector<32x128xf32> to vector<32x128xbf16>
    %16 = arith.truncf %13 : vector<128x512xf32> to vector<128x512xbf16>
    %cst_4 = arith.constant dense<0.000000e+00> : vector<32x512xf32>
    %17 = tpu.matmul %15, %16, %cst_4 {dimension_numbers = #tpu.dot_dimension_numbers<[1], [0], [0], [1], [0, 0, 1, 1], [], []>} : vector<32x128xbf16>, vector<128x512xbf16>, vector<32x512xf32> -> vector<32x512xf32>
    %c144 = arith.constant 144 : index
    %c0_5 = arith.constant 0 : index
    %18 = vector.load %arg2[%c144, %c0_5] : memref<192x512xf32, #tpu.memory_space<vmem>>, vector<2x512xf32>
    "tpu.trace_start"() <{level = 10 : i32, message = "cl,bl->cb"}> : () -> ()
    %cst_6 = arith.constant dense<0.000000e+00> : vector<32x2xf32>
    %19 = tpu.matmul %17, %18, %cst_6 {dimension_numbers = #tpu.dot_dimension_numbers<[1], [1], [0], [0], [0, 0, 1, 0], [], []>} : vector<32x512xf32>, vector<2x512xf32>, vector<32x2xf32> -> vector<32x2xf32>
    "tpu.trace_stop"() : () -> ()
    %c32 = arith.constant 32 : index
    %c0_7 = arith.constant 0 : index
    %20 = vector.load %arg2[%c32, %c0_7] : memref<192x512xf32, #tpu.memory_space<vmem>>, vector<4x32xf32>
    %c40 = arith.constant 40 : index
    %c0_8 = arith.constant 0 : index
    %21 = vector.load %arg2[%c40, %c0_8] : memref<192x512xf32, #tpu.memory_space<vmem>>, vector<4x1xf32>
    %cst_9 = arith.constant dense<0.000000e+00> : vector<4x2xf32>
    %22 = tpu.matmul %20, %19, %cst_9 {dimension_numbers = #tpu.dot_dimension_numbers<[1], [0], [0], [1], [0, 0, 1, 1], [], []>} : vector<4x32xf32>, vector<32x2xf32>, vector<4x2xf32> -> vector<4x2xf32>
    %23 = vector.broadcast %21 : vector<4x1xf32> to vector<4x2xf32>
    %24 = arith.addf %22, %23 : vector<4x2xf32>
    %cst_10 = arith.constant 0.000000e+00 : f32
    %25 = vector.broadcast %cst_10 : f32 to vector<4x2xf32>
    %26 = arith.maximumf %24, %25 : vector<4x2xf32>
    %c48 = arith.constant 48 : index
    %c0_11 = arith.constant 0 : index
    %27 = vector.load %arg2[%c48, %c0_11] : memref<192x512xf32, #tpu.memory_space<vmem>>, vector<32x4xf32>
    %c80 = arith.constant 80 : index
    %c0_12 = arith.constant 0 : index
    %28 = vector.load %arg2[%c80, %c0_12] : memref<192x512xf32, #tpu.memory_space<vmem>>, vector<32x1xf32>
    %cst_13 = arith.constant dense<0.000000e+00> : vector<32x2xf32>
    %29 = tpu.matmul %27, %26, %cst_13 {dimension_numbers = #tpu.dot_dimension_numbers<[1], [0], [0], [1], [0, 0, 1, 1], [], []>} : vector<32x4xf32>, vector<4x2xf32>, vector<32x2xf32> -> vector<32x2xf32>
    %30 = vector.broadcast %28 : vector<32x1xf32> to vector<32x2xf32>
    %31 = arith.addf %29, %30 : vector<32x2xf32>
    %32 = arith.negf %31 : vector<32x2xf32>
    %33 = math.exp %32 : vector<32x2xf32>
    %cst_14 = arith.constant 1.000000e+00 : f32
    %34 = vector.broadcast %cst_14 : f32 to vector<32x2xf32>
    %35 = arith.addf %34, %33 : vector<32x2xf32>
    %36 = arith.divf %34, %35 : vector<32x2xf32>
    %cst_15 = arith.constant dense<0.000000e+00> : vector<32x512xf32>
    %37 = tpu.matmul %36, %18, %cst_15 {dimension_numbers = #tpu.dot_dimension_numbers<[1], [0], [0], [1], [0, 0, 1, 1], [], []>} : vector<32x2xf32>, vector<2x512xf32>, vector<32x512xf32> -> vector<32x512xf32>
    %38 = arith.mulf %17, %37 : vector<32x512xf32>
    %c112 = arith.constant 112 : index
    %c0_16 = arith.constant 0 : index
    %39 = vector.load %arg2[%c112, %c0_16] : memref<192x512xf32, #tpu.memory_space<vmem>>, vector<16x32xf32>
    %c128 = arith.constant 128 : index
    %c0_17 = arith.constant 0 : index
    %40 = vector.load %arg2[%c128, %c0_17] : memref<192x512xf32, #tpu.memory_space<vmem>>, vector<16x1xf32>
    %41 = arith.truncf %39 : vector<16x32xf32> to vector<16x32xbf16>
    %42 = arith.truncf %38 : vector<32x512xf32> to vector<32x512xbf16>
    %cst_18 = arith.constant dense<0.000000e+00> : vector<16x512xf32>
    %43 = tpu.matmul %41, %42, %cst_18 {dimension_numbers = #tpu.dot_dimension_numbers<[1], [0], [0], [1], [0, 0, 1, 1], [], []>} : vector<16x32xbf16>, vector<32x512xbf16>, vector<16x512xf32> -> vector<16x512xf32>
    %44 = vector.broadcast %40 : vector<16x1xf32> to vector<16x512xf32>
    %45 = arith.addf %43, %44 : vector<16x512xf32>
    %c0_19 = arith.constant 0 : index
    %c0_20 = arith.constant 0 : index
    %46 = vector.load %arg3[%c0_19, %c0_20] : memref<16x512xf32, #tpu.memory_space<vmem>>, vector<16x512xf32>
    tpu.vector_store %arg3[%c0_19, %c0_20], %45 {strides = array<i32>} : memref<16x512xf32, #tpu.memory_space<vmem>>, vector<16x512xf32>,
    return
  }
  func.func @transform_0(%arg0: i32) -> (i32, i32) {
    %c0_i32 = arith.constant 0 : i32
    %c0_i32_0 = arith.constant 0 : i32
    return %c0_i32, %arg0 : i32, i32
  }
  func.func @transform_1(%arg0: i32) -> (i32, i32) {
    %c0_i32 = arith.constant 0 : i32
    %c0_i32_0 = arith.constant 0 : i32
    %c0_i32_1 = arith.constant 0 : i32
    return %c0_i32, %c0_i32_0 : i32, i32
  }
  func.func @transform_2(%arg0: i32) -> (i32, i32) {
    %c0_i32 = arith.constant 0 : i32
    %c0_i32_0 = arith.constant 0 : i32
    return %c0_i32, %arg0 : i32, i32
  }
}

</mosaic_0001>

<llo_original>
// kernel: pce_forward.1
$region0: #{pce_forward.1}
  #allocation0 [shape = 'u32[]', space=smem, size = 0x4, offset = 0x4, fixed_abs, tag = 'smem constant byte address 0x4 - core index']
  #allocation1 [shape = 'u32[144,128]{1,0:T(1,128)}', space=vmem, size = 0x12000, scoped, tag = 'internal scratch']
  %s0 = inlined_call_operand.vmem [shape: f32[4,512], index: 0, kind: input, shape index: {}]
  %s1 = inlined_call_operand.hbm [shape: f32[192,512], index: 1, kind: input, shape index: {}]
  %s2 = inlined_call_operand.vmem [shape: f32[16,512], index: 2, kind: output, shape index: {}]
  %s3 = sld [smem:[#allocation0]]
  $region22: #{pce_forward.1} parent=0
    _
  %s5 = ssub.s32 1, %s3
  %s6 = scalar_select 0, %s5, %s3
  $region1: #{pce_forward.1} parent=0
    #allocation2 [shape = 'u8[393216]{0}', space=vmem, size = 0x60000, scoped, tag = 'input window, operand 1, single buffered']
    #allocation3 [shape = 's32[1]{0}', space=sflag, size = 0x4, scoped, tag = 'scoped memory for pce_forward.1']
    %7 = vsyncpa [#allocation3], 0
    // Predicated region
    $region2: #{pce_forward.1} parent=1 // pred_check
      _
    $region3: #{pce_forward.1} parent=1 // pred_check_branch
      %9 = sbr.rel (0) target = $region5
    $region4: #{pce_forward.1} parent=1 // pred_region
      _
    $region5: #{pce_forward.1} parent=1 // pred_fallthru
      _
    // Predicated region
    $region6: #{pce_forward.1} parent=1 // pred_check
      _
    $region7: #{pce_forward.1} parent=1 // pred_check_branch
      %11 = sbr.rel (0) target = $region9
    $region8: #{pce_forward.1} parent=1 // pred_region
      %s13 = ssub.s32 12288, 12288
      %14 = vsyncadd [#allocation3], %s13
      %s15 = sshll.u32 [#allocation2], 4
      %s16 = int_to_ptr.vmem [resolvable:$true] %s15
      %21 = dma.hbm_to_vmem [thread:$0]  %s1, 12288, %s16, [#allocation3], 512, 512, 32
    $region9: #{pce_forward.1} parent=1 // pred_fallthru
      _
    // Predicated region
    $region10: #{pce_forward.1} parent=1 // pred_check
      _
    $region11: #{pce_forward.1} parent=1 // pred_check_branch
      %23 = sbr.rel (0) target = $region13
    $region12: #{pce_forward.1} parent=1 // pred_region
      %24 = dma.done [#allocation3], 12288
    $region13: #{pce_forward.1} parent=1 // pred_fallthru
      _
    %v26 = vld [vmem:[%s0] sm:$0xff]
    %v27 = vld [vmem:[%s0 + $0x8] sm:$0xff]
    %v30 = vcombine.high %v26, %v26
    %v31 = vcombine.high %v27, %v27
    %34 = vrot.lane.b32.xlu0 %v26, 17
    %v35 = vpop.permute.xlu0 %34
    %36 = vrot.lane.b32.xlu0 %v30, 17
    %v37 = vpop.permute.xlu0 %36
    %38 = vrot.lane.b32.xlu0 %v27, 17
    %v39 = vpop.permute.xlu0 %38
    %40 = vrot.lane.b32.xlu0 %v31, 17
    %v41 = vpop.permute.xlu0 %40
    %v42 = vlaneseq
    %v43 = vand.u32 %v42, 127
    %vm44 = vcmp.lt.s32.totalorder %v43, 17
    %v45 = vsel %vm44, %v39, %v41
    %v46 = vsel %vm44, %v37, %v39
    %v47 = vsel %vm44, %v35, %v37
    %v48 = vsel %vm44, %v41, %v35
    %49 = vrot.lane.b32.xlu0 %v26, 16
    %v50 = vpop.permute.xlu0 %49
    %51 = vrot.lane.b32.xlu0 %v30, 16
    %v52 = vpop.permute.xlu0 %51
    %53 = vrot.lane.b32.xlu0 %v27, 16
    %v54 = vpop.permute.xlu0 %53
    %55 = vrot.lane.b32.xlu0 %v31, 16
    %v56 = vpop.permute.xlu0 %55
    %vm57 = vcmp.lt.s32.totalorder %v43, 16
    %v58 = vsel %vm57, %v54, %v56
    %v59 = vsel %vm57, %v52, %v54
    %v60 = vsel %vm57, %v50, %v52
    %v61 = vsel %vm57, %v56, %v50
    %62 = vrot.lane.b32.xlu0 %v26, 15
    %v63 = vpop.permute.xlu0 %62
    %64 = vrot.lane.b32.xlu0 %v30, 15
    %v65 = vpop.permute.xlu0 %64
    %66 = vrot.lane.b32.xlu0 %v27, 15
    %v67 = vpop.permute.xlu0 %66
    %68 = vrot.lane.b32.xlu0 %v31, 15
    %v69 = vpop.permute.xlu0 %68
    %vm70 = vcmp.lt.s32.totalorder %v43, 15
    %v71 = vsel %vm70, %v67, %v69
    %v72 = vsel %vm70, %v65, %v67
    %v73 = vsel %vm70, %v63, %v65
    %v74 = vsel %vm70, %v69, %v63
    %75 = vrot.lane.b32.xlu0 %v26, 1
    %v76 = vpop.permute.xlu0 %75
    %77 = vrot.lane.b32.xlu0 %v30, 1
    %v78 = vpop.permute.xlu0 %77
    %79 = vrot.lane.b32.xlu0 %v27, 1
    %v80 = vpop.permute.xlu0 %79
    %81 = vrot.lane.b32.xlu0 %v31, 1
    %v82 = vpop.permute.xlu0 %81
    %vm83 = vcmp.lt.s32.totalorder %v43, 1
    %v84 = vsel %vm83, %v80, %v82
    %v85 = vsel %vm83, %v78, %v80
    %v86 = vsel %vm83, %v76, %v78
    %v87 = vsel %vm83, %v82, %v76
    %88 = vrot.lane.b32.xlu0 %v26, 127
    %v89 = vpop.permute.xlu0 %88
    %90 = vrot.lane.b32.xlu0 %v30, 127
    %v91 = vpop.permute.xlu0 %90
    %92 = vrot.lane.b32.xlu0 %v27, 127
    %v93 = vpop.permute.xlu0 %92
    %94 = vrot.lane.b32.xlu0 %v31, 127
    %v95 = vpop.permute.xlu0 %94
    %vm96 = vcmp.lt.s32.totalorder %v43, 127
    %v97 = vsel %vm96, %v93, %v95
    %v98 = vsel %vm96, %v91, %v93
    %v99 = vsel %vm96, %v89, %v91
    %v100 = vsel %vm96, %v95, %v89
    %101 = vrot.lane.b32.xlu0 %v26, 113
    %v102 = vpop.permute.xlu0 %101
    %103 = vrot.lane.b32.xlu0 %v30, 113
    %v104 = vpop.permute.xlu0 %103
    %105 = vrot.lane.b32.xlu0 %v27, 113
    %v106 = vpop.permute.xlu0 %105
    %107 = vrot.lane.b32.xlu0 %v31, 113
    %v108 = vpop.permute.xlu0 %107
    %vm109 = vcmp.lt.s32.totalorder %v43, 113
    %v110 = vsel %vm109, %v106, %v108
    %v111 = vsel %vm109, %v104, %v106
    %v112 = vsel %vm109, %v102, %v104
    %v113 = vsel %vm109, %v108, %v102
    %114 = vrot.lane.b32.xlu0 %v26, 112
    %v115 = vpop.permute.xlu0 %114
    %116 = vrot.lane.b32.xlu0 %v30, 112
    %v117 = vpop.permute.xlu0 %116
    %118 = vrot.lane.b32.xlu0 %v27, 112
    %v119 = vpop.permute.xlu0 %118
    %120 = vrot.lane.b32.xlu0 %v31, 112
    %v121 = vpop.permute.xlu0 %120
    %vm122 = vcmp.lt.s32.totalorder %v43, 112
    %v123 = vsel %vm122, %v119, %v121
    %v124 = vsel %vm122, %v117, %v119
    %v125 = vsel %vm122, %v115, %v117
    %v126 = vsel %vm122, %v121, %v115
    %127 = vrot.lane.b32.xlu0 %v26, 111
    %v128 = vpop.permute.xlu0 %127
    %129 = vrot.lane.b32.xlu0 %v30, 111
    %v130 = vpop.permute.xlu0 %129
    %131 = vrot.lane.b32.xlu0 %v27, 111
    %v132 = vpop.permute.xlu0 %131
    %133 = vrot.lane.b32.xlu0 %v31, 111
    %v134 = vpop.permute.xlu0 %133
    %vm135 = vcmp.lt.s32.totalorder %v43, 111
    %v136 = vsel %vm135, %v132, %v134
    %v137 = vsel %vm135, %v130, %v132
    %v138 = vsel %vm135, %v128, %v130
    %v139 = vsel %vm135, %v134, %v128
    %v144 = vrot.slane %v61, 4
    %v145 = vrot.slane %v60, 4
    %v146 = vrot.slane %v59, 4
    %v147 = vrot.slane %v58, 4
    %v156 = vrot.slane %v87, 4
    %v157 = vrot.slane %v86, 4
    %v158 = vrot.slane %v85, 4
    %v159 = vrot.slane %v84, 4
    %v168 = vrot.slane %v99, 4
    %v169 = vrot.slane %v98, 4
    %v170 = vrot.slane %v97, 4
    %v171 = vrot.slane %v100, 4
    %v180 = vrot.slane %v125, 4
    %v181 = vrot.slane %v124, 4
    %v182 = vrot.slane %v123, 4
    %v183 = vrot.slane %v126, 4
    %vm188 = vcmask 1043456
    %v189 = vsel %vm188, %v48, %v144
    %v190 = vsel %vm188, %v47, %v145
    %v191 = vsel %vm188, %v46, %v146
    %v192 = vsel %vm188, %v45, %v147
    %v193 = vsel %vm188, %v74, %v156
    %v194 = vsel %vm188, %v73, %v157
    %v195 = vsel %vm188, %v72, %v158
    %v196 = vsel %vm188, %v71, %v159
    %v197 = vsel %vm188, %v26, %v168
    %v198 = vsel %vm188, %v30, %v169
    %v199 = vsel %vm188, %v27, %v170
    %v200 = vsel %vm188, %v31, %v171
    %v201 = vsel %vm188, %v112, %v180
    %v202 = vsel %vm188, %v111, %v181
    %v203 = vsel %vm188, %v110, %v182
    %v204 = vsel %vm188, %v113, %v183
    %v205 = vld [vmem:[#allocation2 + $0x260] sm:$0xff]
    %v206 = vld [vmem:[#allocation2 + $0x268] sm:$0xff]
    %v207 = vld [vmem:[#allocation2 + $0x270] sm:$0xff]
    %v208 = vld [vmem:[#allocation2 + $0x278] sm:$0xff]
    %v209 = vld [vmem:[#allocation2 + $0x280] sm:$0xff]
    %v210 = vld [vmem:[#allocation2 + $0x288] sm:$0xff]
    %v211 = vld [vmem:[#allocation2 + $0x290] sm:$0xff]
    %v212 = vld [vmem:[#allocation2 + $0x298] sm:$0xff]
    %v213 = vld [vmem:[#allocation2 + $0x2a0] sm:$0xff]
    %v214 = vld [vmem:[#allocation2 + $0x2a8] sm:$0xff]
    %v215 = vld [vmem:[#allocation2 + $0x2b0] sm:$0xff]
    %v216 = vld [vmem:[#allocation2 + $0x2b8] sm:$0xff]
    %v217 = vld [vmem:[#allocation2 + $0x2c0] sm:$0xff]
    %v218 = vld [vmem:[#allocation2 + $0x2c8] sm:$0xff]
    %v219 = vld [vmem:[#allocation2 + $0x2d0] sm:$0xff]
    %v220 = vld [vmem:[#allocation2 + $0x2d8] sm:$0xff]
    %v221 = vld [vmem:[#allocation2 + $0x2e0] sm:$0xf]
    %v222 = vld [vmem:[#allocation2 + $0x2e8] sm:$0xf]
    %v223 = vld [vmem:[#allocation2 + $0x2f0] sm:$0xf]
    %v224 = vld [vmem:[#allocation2 + $0x2f8] sm:$0xf]
    %v225 = vmul.f32 %v189, %v205
    %v226 = vmul.f32 %v190, %v206
    %v227 = vmul.f32 %v191, %v207
    %v228 = vmul.f32 %v192, %v208
    %v229 = vmul.f32 %v193, %v209
    %v230 = vmul.f32 %v194, %v210
    %v231 = vmul.f32 %v195, %v211
    %v232 = vmul.f32 %v196, %v212
    %v233 = vmul.f32 %v197, %v213
    %v234 = vmul.f32 %v198, %v214
    %v235 = vmul.f32 %v199, %v215
    %v236 = vmul.f32 %v200, %v216
    %v237 = vmul.f32 %v201, %v217
    %v238 = vmul.f32 %v202, %v218
    %v239 = vmul.f32 %v203, %v219
    %v240 = vmul.f32 %v204, %v220
    %v241 = vmul.f32 %v138, %v221
    %v242 = vmul.f32 %v137, %v222
    %v243 = vmul.f32 %v136, %v223
    %v244 = vmul.f32 %v139, %v224
    %v245 = vsel %vm188, %v241, 0.0
    %v246 = vsel %vm188, %v242, 0.0
    %v247 = vsel %vm188, %v243, 0.0
    %v248 = vsel %vm188, %v244, 0.0
    %v249 = vld [vmem:[#allocation2] sm:$0xff]
    %v250 = vld [vmem:[#allocation2 + $0x20] sm:$0xff]
    %v251 = vld [vmem:[#allocation2 + $0x40] sm:$0xff]
    %v252 = vld [vmem:[#allocation2 + $0x60] sm:$0xff]
    %v253 = vpack.c.bf16 %v250, %v249
    %v254 = vpack.c.bf16 %v252, %v251
    %v255 = vpack.c.bf16 %v229, %v225
    %v256 = vpack.c.bf16 %v230, %v226
    %v257 = vpack.c.bf16 %v231, %v227
    %v258 = vpack.c.bf16 %v232, %v228
    %v259 = vpack.c.bf16 %v237, %v233
    %v260 = vpack.c.bf16 %v238, %v234
    %v261 = vpack.c.bf16 %v239, %v235
    %v262 = vpack.c.bf16 %v240, %v236
    %v263 = vpack.c.bf16 0.0, %v245
    %v264 = vpack.c.bf16 0.0, %v246
    %v265 = vpack.c.bf16 0.0, %v247
    %v266 = vpack.c.bf16 0.0, %v248
    %v267 = vpack.c.bf16 0.0, 0.0
    %268 = vmatprep.subr.bf16.mxu0 %v256
    %269 = vmatpush1.bf16.msra.mxu0 %v255
    %270 = vmatprep.subr.bf16.mxu0 %v260
    %271 = vmatpush1.bf16.msra.mxu0 %v259
    %272 = vmatprep.subr.bf16.mxu0 %v264
    %273 = vmatpush1.bf16.msra.mxu0 %v263
    %274 = vmatprep.subr.bf16.mxu0 %v267
    %275 = vmatpush1.bf16.msra.mxu0 %v267
    %276 = vmatprep.subr.bf16.mxu0 %v267
    %277 = vmatpush1.bf16.msra.mxu0 %v267
    %278 = vmatprep.subr.bf16.mxu0 %v267
    %279 = vmatpush1.bf16.msra.mxu0 %v267
    %280 = vmatprep.subr.bf16.mxu0 %v267
    %281 = vmatpush1.bf16.msra.mxu0 %v267
    %282 = vmatprep.subr.bf16.mxu0 %v267
    %283 = vmatpush1.bf16.msra.mxu0 %v267
    %284 = vmatprep.subr.bf16.mxu0 0
    %285 = vmatpush1.bf16.msra.mxu0 0
    %286 = vmatprep.subr.bf16.mxu0 0
    %287 = vmatpush1.bf16.msra.mxu0 0
    %288 = vmatprep.subr.bf16.mxu0 0
    %289 = vmatpush1.bf16.msra.mxu0 0
    %290 = vmatprep.subr.bf16.mxu0 0
    %291 = vmatpush1.bf16.msra.mxu0 0
    %292 = vmatprep.subr.bf16.mxu0 0
    %293 = vmatpush1.bf16.msra.mxu0 0
    %294 = vmatprep.subr.bf16.mxu0 0
    %295 = vmatpush1.bf16.msra.mxu0 0
    %296 = vmatprep.subr.bf16.mxu0 0
    %297 = vmatpush1.bf16.msra.mxu0 0
    %298 = vmatprep.subr.bf16.mxu0 0
    %299 = vmatpush1.bf16.msra.mxu0 0
    %300 = vmatprep.mubr.bf16.mxu0 0
    %301 = vmatmul.mubr.bf16.gmra.mrb[0].mxu0 %v253
    %v302 = vpop.f32.mrb[0].mxu0
    %v303 = vadd.f32 0.0, %v302
    %v304 = vpop.f32.mrb[0].mxu0
    %v305 = vadd.f32 0.0, %v304
    %v306 = vpop.f32.mrb[0].mxu0
    %v307 = vadd.f32 0.0, %v306
    %v308 = vpop.f32.mrb[0].mxu0
    %v309 = vadd.f32 0.0, %v308
    %310 = vmatprep.mubr.bf16.mxu0 0
    %311 = vmatmul.mubr.bf16.gmra.mrb[0].mxu0 %v254
    %v312 = vpop.f32.mrb[0].mxu0
    %v313 = vadd.f32 0.0, %v312
    %v314 = vpop.f32.mrb[0].mxu0
    %v315 = vadd.f32 0.0, %v314
    %v316 = vpop.f32.mrb[0].mxu0
    %v317 = vadd.f32 0.0, %v316
    %v318 = vpop.f32.mrb[0].mxu0
    %v319 = vadd.f32 0.0, %v318
    %320 = vdwg.mxu0
    %321 = vmatprep.subr.bf16.mxu0 %v258
    %322 = vmatpush1.bf16.msra.mxu0 %v257
    %323 = vmatprep.subr.bf16.mxu0 %v262
    %324 = vmatpush1.bf16.msra.mxu0 %v261
    %325 = vmatprep.subr.bf16.mxu0 %v266
    %326 = vmatpush1.bf16.msra.mxu0 %v265
    %327 = vmatprep.subr.bf16.mxu0 %v267
    %328 = vmatpush1.bf16.msra.mxu0 %v267
    %329 = vmatprep.subr.bf16.mxu0 %v267
    %330 = vmatpush1.bf16.msra.mxu0 %v267
    %331 = vmatprep.subr.bf16.mxu0 %v267
    %332 = vmatpush1.bf16.msra.mxu0 %v267
    %333 = vmatprep.subr.bf16.mxu0 %v267
    %334 = vmatpush1.bf16.msra.mxu0 %v267
    %335 = vmatprep.subr.bf16.mxu0 %v267
    %336 = vmatpush1.bf16.msra.mxu0 %v267
    %337 = vmatprep.subr.bf16.mxu0 0
    %338 = vmatpush1.bf16.msra.mxu0 0
    %339 = vmatprep.subr.bf16.mxu0 0
    %340 = vmatpush1.bf16.msra.mxu0 0
    %341 = vmatprep.subr.bf16.mxu0 0
    %342 = vmatpush1.bf16.msra.mxu0 0
    %343 = vmatprep.subr.bf16.mxu0 0
    %344 = vmatpush1.bf16.msra.mxu0 0
    %345 = vmatprep.subr.bf16.mxu0 0
    %346 = vmatpush1.bf16.msra.mxu0 0
    %347 = vmatprep.subr.bf16.mxu0 0
    %348 = vmatpush1.bf16.msra.mxu0 0
    %349 = vmatprep.subr.bf16.mxu0 0
    %350 = vmatpush1.bf16.msra.mxu0 0
    %351 = vmatprep.subr.bf16.mxu0 0
    %352 = vmatpush1.bf16.msra.mxu0 0
    %353 = vmatprep.mubr.bf16.mxu0 0
    %354 = vmatmul.mubr.bf16.gmra.mrb[0].mxu0 %v253
    %v355 = vpop.f32.mrb[0].mxu0
    %v356 = vadd.f32 0.0, %v355
    %v357 = vpop.f32.mrb[0].mxu0
    %v358 = vadd.f32 0.0, %v357
    %v359 = vpop.f32.mrb[0].mxu0
    %v360 = vadd.f32 0.0, %v359
    %v361 = vpop.f32.mrb[0].mxu0
    %v362 = vadd.f32 0.0, %v361
    %363 = vmatprep.mubr.bf16.mxu0 0
    %364 = vmatmul.mubr.bf16.gmra.mrb[0].mxu0 %v254
    %v365 = vpop.f32.mrb[0].mxu0
    %v366 = vadd.f32 0.0, %v365
    %v367 = vpop.f32.mrb[0].mxu0
    %v368 = vadd.f32 0.0, %v367
    %v369 = vpop.f32.mrb[0].mxu0
    %v370 = vadd.f32 0.0, %v369
    %v371 = vpop.f32.mrb[0].mxu0
    %v372 = vadd.f32 0.0, %v371
    %373 = vdwg.mxu0
    %v374 = vld [vmem:[#allocation2 + $0x240] sm:$0x3]
    %v375 = vld [vmem:[#allocation2 + $0x248] sm:$0x3]
    %v376 = vld [vmem:[#allocation2 + $0x250] sm:$0x3]
    %v377 = vld [vmem:[#allocation2 + $0x258] sm:$0x3]
    %378 = vmatprep.subr.mxu0 %v375
    %379 = vmatpush1.xpose.msra.mxu0 %v374
    %380 = vmatprep.subr.mxu0 0.0
    %381 = vmatpush1.xpose.msra.mxu0 0.0
    %382 = vmatprep.subr.mxu0 0.0
    %383 = vmatpush1.xpose.msra.mxu0 0.0
    %384 = vmatprep.subr.mxu0 0.0
    %385 = vmatpush1.xpose.msra.mxu0 0.0
    %386 = vmatprep.subr.mxu0 0.0
    %387 = vmatpush1.xpose.msra.mxu0 0.0
    %388 = vmatprep.subr.mxu0 0.0
    %389 = vmatpush1.xpose.msra.mxu0 0.0
    %390 = vmatprep.subr.mxu0 0.0
    %391 = vmatpush1.xpose.msra.mxu0 0.0
    %392 = vmatprep.subr.mxu0 0.0
    %393 = vmatpush1.xpose.msra.mxu0 0.0
    %394 = vmatprep.subr.mxu0 0.0
    %395 = vmatpush1.xpose.msra.mxu0 0.0
    %396 = vmatprep.subr.mxu0 0.0
    %397 = vmatpush1.xpose.msra.mxu0 0.0
    %398 = vmatprep.subr.mxu0 0.0
    %399 = vmatpush1.xpose.msra.mxu0 0.0
    %400 = vmatprep.subr.mxu0 0.0
    %401 = vmatpush1.xpose.msra.mxu0 0.0
    %402 = vmatprep.subr.mxu0 0.0
    %403 = vmatpush1.xpose.msra.mxu0 0.0
    %404 = vmatprep.subr.mxu0 0.0
    %405 = vmatpush1.xpose.msra.mxu0 0.0
    %406 = vmatprep.subr.mxu0 0.0
    %407 = vmatpush1.xpose.msra.mxu0 0.0
    %408 = vmatprep.subr.mxu0 0.0
    %409 = vmatpush1.xpose.msra.mxu0 0.0
    %410 = vmatprep.subr.mxu0 0.0
    %411 = vmatpush1.xpose.msra.mxu0 0.0
    %412 = vmatprep.subr.mxu0 0.0
    %413 = vmatpush1.xpose.msra.mxu0 0.0
    %414 = vmatprep.subr.mxu0 0.0
    %415 = vmatpush1.xpose.msra.mxu0 0.0
    %416 = vmatprep.subr.mxu0 0.0
    %417 = vmatpush1.xpose.msra.mxu0 0.0
    %418 = vmatprep.subr.mxu0 0.0
    %419 = vmatpush1.xpose.msra.mxu0 0.0
    %420 = vmatprep.subr.mxu0 0.0
    %421 = vmatpush1.xpose.msra.mxu0 0.0
    %422 = vmatprep.subr.mxu0 0.0
    %423 = vmatpush1.xpose.msra.mxu0 0.0
    %424 = vmatprep.subr.mxu0 0.0
    %425 = vmatpush1.xpose.msra.mxu0 0.0
    %426 = vmatprep.subr.mxu0 0.0
    %427 = vmatpush1.xpose.msra.mxu0 0.0
    %428 = vmatprep.subr.mxu0 0.0
    %429 = vmatpush1.xpose.msra.mxu0 0.0
    %430 = vmatprep.subr.mxu0 0.0
    %431 = vmatpush1.xpose.msra.mxu0 0.0
    %432 = vmatprep.subr.mxu0 0.0
    %433 = vmatpush1.xpose.msra.mxu0 0.0
    %434 = vmatprep.subr.mxu0 0.0
    %435 = vmatpush1.xpose.msra.mxu0 0.0
    %436 = vmatprep.subr.mxu0 0.0
    %437 = vmatpush1.xpose.msra.mxu0 0.0
    %438 = vmatprep.subr.mxu0 0.0
    %439 = vmatpush1.xpose.msra.mxu0 0.0
    %440 = vmatprep.subr.mxu0 0.0
    %441 = vmatpush1.xpose.msra.mxu0 0.0
    %442 = vmatprep.mubr.f32.mxu0 %v305
    %443 = vmatmul.mubr.f32.gmra.mrb[0].mxu0 %v303
    %v444 = vpop.f32.mrb[0].mxu0
    %v445 = vadd.f32 0.0, %v444
    %v446 = vpop.f32.mrb[0].mxu0
    %447 = vmatprep.mubr.f32.mxu0 %v309
    %448 = vmatmul.mubr.f32.gmra.mrb[0].mxu0 %v307
    %v449 = vpop.f32.mrb[0].mxu0
    %v450 = vadd.f32 0.0, %v449
    %v451 = vpop.f32.mrb[0].mxu0
    %452 = vmatprep.mubr.f32.mxu0 %v315
    %453 = vmatmul.mubr.f32.gmra.mrb[0].mxu0 %v313
    %v454 = vpop.f32.mrb[0].mxu0
    %v455 = vadd.f32 0.0, %v454
    %v456 = vpop.f32.mrb[0].mxu0
    %457 = vmatprep.mubr.f32.mxu0 %v319
    %458 = vmatmul.mubr.f32.gmra.mrb[0].mxu0 %v317
    %v459 = vpop.f32.mrb[0].mxu0
    %v460 = vadd.f32 0.0, %v459
    %v461 = vpop.f32.mrb[0].mxu0
    %462 = vdwg.mxu0
    %463 = vmatprep.subr.mxu0 %v377
    %464 = vmatpush1.xpose.msra.mxu0 %v376
    %465 = vmatprep.subr.mxu0 0.0
    %466 = vmatpush1.xpose.msra.mxu0 0.0
    %467 = vmatprep.subr.mxu0 0.0
    %468 = vmatpush1.xpose.msra.mxu0 0.0
    %469 = vmatprep.subr.mxu0 0.0
    %470 = vmatpush1.xpose.msra.mxu0 0.0
    %471 = vmatprep.subr.mxu0 0.0
    %472 = vmatpush1.xpose.msra.mxu0 0.0
    %473 = vmatprep.subr.mxu0 0.0
    %474 = vmatpush1.xpose.msra.mxu0 0.0
    %475 = vmatprep.subr.mxu0 0.0
    %476 = vmatpush1.xpose.msra.mxu0 0.0
    %477 = vmatprep.subr.mxu0 0.0
    %478 = vmatpush1.xpose.msra.mxu0 0.0
    %479 = vmatprep.subr.mxu0 0.0
    %480 = vmatpush1.xpose.msra.mxu0 0.0
    %481 = vmatprep.subr.mxu0 0.0
    %482 = vmatpush1.xpose.msra.mxu0 0.0
    %483 = vmatprep.subr.mxu0 0.0
    %484 = vmatpush1.xpose.msra.mxu0 0.0
    %485 = vmatprep.subr.mxu0 0.0
    %486 = vmatpush1.xpose.msra.mxu0 0.0
    %487 = vmatprep.subr.mxu0 0.0
    %488 = vmatpush1.xpose.msra.mxu0 0.0
    %489 = vmatprep.subr.mxu0 0.0
    %490 = vmatpush1.xpose.msra.mxu0 0.0
    %491 = vmatprep.subr.mxu0 0.0
    %492 = vmatpush1.xpose.msra.mxu0 0.0
    %493 = vmatprep.subr.mxu0 0.0
    %494 = vmatpush1.xpose.msra.mxu0 0.0
    %495 = vmatprep.subr.mxu0 0.0
    %496 = vmatpush1.xpose.msra.mxu0 0.0
    %497 = vmatprep.subr.mxu0 0.0
    %498 = vmatpush1.xpose.msra.mxu0 0.0
    %499 = vmatprep.subr.mxu0 0.0
    %500 = vmatpush1.xpose.msra.mxu0 0.0
    %501 = vmatprep.subr.mxu0 0.0
    %502 = vmatpush1.xpose.msra.mxu0 0.0
    %503 = vmatprep.subr.mxu0 0.0
    %504 = vmatpush1.xpose.msra.mxu0 0.0
    %505 = vmatprep.subr.mxu0 0.0
    %506 = vmatpush1.xpose.msra.mxu0 0.0
    %507 = vmatprep.subr.mxu0 0.0
    %508 = vmatpush1.xpose.msra.mxu0 0.0
    %509 = vmatprep.subr.mxu0 0.0
    %510 = vmatpush1.xpose.msra.mxu0 0.0
    %511 = vmatprep.subr.mxu0 0.0
    %512 = vmatpush1.xpose.msra.mxu0 0.0
    %513 = vmatprep.subr.mxu0 0.0
    %514 = vmatpush1.xpose.msra.mxu0 0.0
    %515 = vmatprep.subr.mxu0 0.0
    %516 = vmatpush1.xpose.msra.mxu0 0.0
    %517 = vmatprep.subr.mxu0 0.0
    %518 = vmatpush1.xpose.msra.mxu0 0.0
    %519 = vmatprep.subr.mxu0 0.0
    %520 = vmatpush1.xpose.msra.mxu0 0.0
    %521 = vmatprep.subr.mxu0 0.0
    %522 = vmatpush1.xpose.msra.mxu0 0.0
    %523 = vmatprep.subr.mxu0 0.0
    %524 = vmatpush1.xpose.msra.mxu0 0.0
    %525 = vmatprep.subr.mxu0 0.0
    %526 = vmatpush1.xpose.msra.mxu0 0.0
    %527 = vmatprep.mubr.f32.mxu0 %v358
    %528 = vmatmul.mubr.f32.gmra.mrb[0].mxu0 %v356
    %v529 = vpop.f32.mrb[0].mxu0
    %v530 = vadd.f32 %v445, %v529
    %v531 = vpop.f32.mrb[0].mxu0
    %532 = vmatprep.mubr.f32.mxu0 %v362
    %533 = vmatmul.mubr.f32.gmra.mrb[0].mxu0 %v360
    %v534 = vpop.f32.mrb[0].mxu0
    %v535 = vadd.f32 %v450, %v534
    %v536 = vpop.f32.mrb[0].mxu0
    %537 = vmatprep.mubr.f32.mxu0 %v368
    %538 = vmatmul.mubr.f32.gmra.mrb[0].mxu0 %v366
    %v539 = vpop.f32.mrb[0].mxu0
    %v540 = vadd.f32 %v455, %v539
    %v541 = vpop.f32.mrb[0].mxu0
    %542 = vmatprep.mubr.f32.mxu0 %v372
    %543 = vmatmul.mubr.f32.gmra.mrb[0].mxu0 %v370
    %v544 = vpop.f32.mrb[0].mxu0
    %v545 = vadd.f32 %v460, %v544
    %v546 = vpop.f32.mrb[0].mxu0
    %547 = vdwg.mxu0
    %v548 = vld [vmem:[#allocation2 + $0x80] sm:$0xf]
    %v549 = vld [vmem:[#allocation2 + $0xa0] sm:$0xf]
    %551 = vset.pattern.permute.xlu0 0
    %552 = vperm.xlu0 %551, %v549
    %v553 = vpop.permute.xlu0 %552
    %vm555 = vcmask 261120
    %v557 = vsel %vm555, %v548, 0
    %559 = vmatprep.subr.mxu0 0.0
    %560 = vmatpush1.msra.mxu0 %v530
    %561 = vmatprep.subr.mxu0 0.0
    %562 = vmatpush1.msra.mxu0 %v535
    %563 = vmatprep.subr.mxu0 0.0
    %564 = vmatpush1.msra.mxu0 %v540
    %565 = vmatprep.subr.mxu0 0.0
    %566 = vmatpush1.msra.mxu0 %v545
    %567 = vmatprep.subr.mxu0 0.0
    %568 = vmatpush1.msra.mxu0 0.0
    %569 = vmatprep.subr.mxu0 0.0
    %570 = vmatpush1.msra.mxu0 0.0
    %571 = vmatprep.subr.mxu0 0.0
    %572 = vmatpush1.msra.mxu0 0.0
    %573 = vmatprep.subr.mxu0 0.0
    %574 = vmatpush1.msra.mxu0 0.0
    %575 = vmatprep.subr.mxu0 0.0
    %576 = vmatpush1.msra.mxu0 0.0
    %577 = vmatprep.subr.mxu0 0.0
    %578 = vmatpush1.msra.mxu0 0.0
    %579 = vmatprep.subr.mxu0 0.0
    %580 = vmatpush1.msra.mxu0 0.0
    %581 = vmatprep.subr.mxu0 0.0
    %582 = vmatpush1.msra.mxu0 0.0
    %583 = vmatprep.subr.mxu0 0.0
    %584 = vmatpush1.msra.mxu0 0.0
    %585 = vmatprep.subr.mxu0 0.0
    %586 = vmatpush1.msra.mxu0 0.0
    %587 = vmatprep.subr.mxu0 0.0
    %588 = vmatpush1.msra.mxu0 0.0
    %589 = vmatprep.subr.mxu0 0.0
    %590 = vmatpush1.msra.mxu0 0.0
    %591 = vmatprep.subr.mxu0 0.0
    %592 = vmatpush1.msra.mxu0 0.0
    %593 = vmatprep.subr.mxu0 0.0
    %594 = vmatpush1.msra.mxu0 0.0
    %595 = vmatprep.subr.mxu0 0.0
    %596 = vmatpush1.msra.mxu0 0.0
    %597 = vmatprep.subr.mxu0 0.0
    %598 = vmatpush1.msra.mxu0 0.0
    %599 = vmatprep.subr.mxu0 0.0
    %600 = vmatpush1.msra.mxu0 0.0
    %601 = vmatprep.subr.mxu0 0.0
    %602 = vmatpush1.msra.mxu0 0.0
    %603 = vmatprep.subr.mxu0 0.0
    %604 = vmatpush1.msra.mxu0 0.0
    %605 = vmatprep.subr.mxu0 0.0
    %606 = vmatpush1.msra.mxu0 0.0
    %607 = vmatprep.subr.mxu0 0.0
    %608 = vmatpush1.msra.mxu0 0.0
    %609 = vmatprep.subr.mxu0 0.0
    %610 = vmatpush1.msra.mxu0 0.0
    %611 = vmatprep.subr.mxu0 0.0
    %612 = vmatpush1.msra.mxu0 0.0
    %613 = vmatprep.subr.mxu0 0.0
    %614 = vmatpush1.msra.mxu0 0.0
    %615 = vmatprep.subr.mxu0 0.0
    %616 = vmatpush1.msra.mxu0 0.0
    %617 = vmatprep.subr.mxu0 0.0
    %618 = vmatpush1.msra.mxu0 0.0
    %619 = vmatprep.subr.mxu0 0.0
    %620 = vmatpush1.msra.mxu0 0.0
    %621 = vmatprep.subr.mxu0 0.0
    %622 = vmatpush1.msra.mxu0 0.0
    %623 = vmatprep.mubr.f32.mxu0 0.0
    %624 = vmatmul.mubr.f32.gmra.mrb[0].mxu0 %v557
    %v625 = vpop.f32.mrb[0].mxu0
    %v626 = vadd.f32 %v553, %v625
    %v627 = vpop.f32.mrb[0].mxu0
    %628 = vdwg.mxu0
    %v629 = vmax.f32 %v626, 0.0
    %v630 = vld [vmem:[#allocation2 + $0xc0] sm:$0xff]
    %v631 = vld [vmem:[#allocation2 + $0xe0] sm:$0xff]
    %v632 = vld [vmem:[#allocation2 + $0x100] sm:$0xff]
    %v633 = vld [vmem:[#allocation2 + $0x120] sm:$0xff]
    %v634 = vld [vmem:[#allocation2 + $0x140] sm:$0xff]
    %v635 = vld [vmem:[#allocation2 + $0x160] sm:$0xff]
    %v636 = vld [vmem:[#allocation2 + $0x180] sm:$0xff]
    %v637 = vld [vmem:[#allocation2 + $0x1a0] sm:$0xff]
    %639 = vset.pattern.permute.xlu0 0
    %640 = vperm.xlu0 %639, %v634
    %v641 = vpop.permute.xlu0 %640
    %644 = vset.pattern.permute.xlu0 0
    %645 = vperm.xlu0 %644, %v635
    %v646 = vpop.permute.xlu0 %645
    %649 = vset.pattern.permute.xlu0 0
    %650 = vperm.xlu0 %649, %v636
    %v651 = vpop.permute.xlu0 %650
    %654 = vset.pattern.permute.xlu0 0
    %655 = vperm.xlu0 %654, %v637
    %v656 = vpop.permute.xlu0 %655
    %vm658 = vcmask 31744
    %v660 = vsel %vm658, %v630, 0
    %v663 = vsel %vm658, %v631, 0
    %v666 = vsel %vm658, %v632, 0
    %v669 = vsel %vm658, %v633, 0
    %v672 = vsel %vm188, %v629, 0
    %674 = vmatprep.subr.mxu0 0.0
    %675 = vmatpush1.msra.mxu0 %v672
    %676 = vmatprep.subr.mxu0 0.0
    %677 = vmatpush1.msra.mxu0 0.0
    %678 = vmatprep.subr.mxu0 0.0
    %679 = vmatpush1.msra.mxu0 0.0
    %680 = vmatprep.subr.mxu0 0.0
    %681 = vmatpush1.msra.mxu0 0.0
    %682 = vmatprep.subr.mxu0 0.0
    %683 = vmatpush1.msra.mxu0 0.0
    %684 = vmatprep.subr.mxu0 0.0
    %685 = vmatpush1.msra.mxu0 0.0
    %686 = vmatprep.subr.mxu0 0.0
    %687 = vmatpush1.msra.mxu0 0.0
    %688 = vmatprep.subr.mxu0 0.0
    %689 = vmatpush1.msra.mxu0 0.0
    %690 = vmatprep.subr.mxu0 0.0
    %691 = vmatpush1.msra.mxu0 0.0
    %692 = vmatprep.subr.mxu0 0.0
    %693 = vmatpush1.msra.mxu0 0.0
    %694 = vmatprep.subr.mxu0 0.0
    %695 = vmatpush1.msra.mxu0 0.0
    %696 = vmatprep.subr.mxu0 0.0
    %697 = vmatpush1.msra.mxu0 0.0
    %698 = vmatprep.subr.mxu0 0.0
    %699 = vmatpush1.msra.mxu0 0.0
    %700 = vmatprep.subr.mxu0 0.0
    %701 = vmatpush1.msra.mxu0 0.0
    %702 = vmatprep.subr.mxu0 0.0
    %703 = vmatpush1.msra.mxu0 0.0
    %704 = vmatprep.subr.mxu0 0.0
    %705 = vmatpush1.msra.mxu0 0.0
    %706 = vmatprep.subr.mxu0 0.0
    %707 = vmatpush1.msra.mxu0 0.0
    %708 = vmatprep.subr.mxu0 0.0
    %709 = vmatpush1.msra.mxu0 0.0
    %710 = vmatprep.subr.mxu0 0.0
    %711 = vmatpush1.msra.mxu0 0.0
    %712 = vmatprep.subr.mxu0 0.0
    %713 = vmatpush1.msra.mxu0 0.0
    %714 = vmatprep.subr.mxu0 0.0
    %715 = vmatpush1.msra.mxu0 0.0
    %716 = vmatprep.subr.mxu0 0.0
    %717 = vmatpush1.msra.mxu0 0.0
    %718 = vmatprep.subr.mxu0 0.0
    %719 = vmatpush1.msra.mxu0 0.0
    %720 = vmatprep.subr.mxu0 0.0
    %721 = vmatpush1.msra.mxu0 0.0
    %722 = vmatprep.subr.mxu0 0.0
    %723 = vmatpush1.msra.mxu0 0.0
    %724 = vmatprep.subr.mxu0 0.0
    %725 = vmatpush1.msra.mxu0 0.0
    %726 = vmatprep.subr.mxu0 0.0
    %727 = vmatpush1.msra.mxu0 0.0
    %728 = vmatprep.subr.mxu0 0.0
    %729 = vmatpush1.msra.mxu0 0.0
    %730 = vmatprep.subr.mxu0 0.0
    %731 = vmatpush1.msra.mxu0 0.0
    %732 = vmatprep.subr.mxu0 0.0
    %733 = vmatpush1.msra.mxu0 0.0
    %734 = vmatprep.subr.mxu0 0.0
    %735 = vmatpush1.msra.mxu0 0.0
    %736 = vmatprep.subr.mxu0 0.0
    %737 = vmatpush1.msra.mxu0 0.0
    %738 = vmatprep.mubr.f32.mxu0 0.0
    %739 = vmatmul.mubr.f32.gmra.mrb[0].mxu0 %v660
    %v740 = vpop.f32.mrb[0].mxu0
    %v741 = vadd.f32 %v641, %v740
    %v742 = vpop.f32.mrb[0].mxu0
    %743 = vmatprep.mubr.f32.mxu0 0.0
    %744 = vmatmul.mubr.f32.gmra.mrb[0].mxu0 %v663
    %v745 = vpop.f32.mrb[0].mxu0
    %v746 = vadd.f32 %v646, %v745
    %v747 = vpop.f32.mrb[0].mxu0
    %748 = vmatprep.mubr.f32.mxu0 0.0
    %749 = vmatmul.mubr.f32.gmra.mrb[0].mxu0 %v666
    %v750 = vpop.f32.mrb[0].mxu0
    %v751 = vadd.f32 %v651, %v750
    %v752 = vpop.f32.mrb[0].mxu0
    %753 = vmatprep.mubr.f32.mxu0 0.0
    %754 = vmatmul.mubr.f32.gmra.mrb[0].mxu0 %v669
    %v755 = vpop.f32.mrb[0].mxu0
    %v756 = vadd.f32 %v656, %v755
    %v757 = vpop.f32.mrb[0].mxu0
    %758 = vdwg.mxu0
    %v759 = vxor.u32 %v741, 2147483648
    %v760 = vxor.u32 %v746, 2147483648
    %v761 = vxor.u32 %v751, 2147483648
    %v762 = vxor.u32 %v756, 2147483648
    %v763 = vmul.f32 %v759, 1.442695
    %v764 = vpow.pop %v763
    %v765 = vmul.f32 %v760, 1.442695
    %v766 = vpow.pop %v765
    %v767 = vmul.f32 %v761, 1.442695
    %v768 = vpow.pop %v767
    %v769 = vmul.f32 %v762, 1.442695
    %v770 = vpow.pop %v769
    %v771 = vadd.f32 %v764, 1.0
    %v772 = vadd.f32 %v766, 1.0
    %v773 = vadd.f32 %v768, 1.0
    %v774 = vadd.f32 %v770, 1.0
    %v775 = vrcp.pop %v771
    %v776 = vmul.f32 1.0, %v775
    %v777 = vrcp.pop %v772
    %v778 = vmul.f32 1.0, %v777
    %v779 = vrcp.pop %v773
    %v780 = vmul.f32 1.0, %v779
    %v781 = vrcp.pop %v774
    %v782 = vmul.f32 1.0, %v781
    %vm783 = vcmask 15360
    %v785 = vsel %vm783, %v776, 0
    %v788 = vsel %vm783, %v778, 0
    %v791 = vsel %vm783, %v780, 0
    %v794 = vsel %vm783, %v782, 0
    %vm796 = vcmask 1041408
    %v798 = vsel %vm796, %v374, 0
    %v801 = vsel %vm796, %v375, 0
    %v804 = vsel %vm796, %v376, 0
    %v807 = vsel %vm796, %v377, 0
    %809 = vmatprep.subr.mxu0 %v801
    %810 = vmatpush1.msra.mxu0 %v798
    %811 = vmatprep.subr.mxu0 0.0
    %812 = vmatpush1.msra.mxu0 0.0
    %813 = vmatprep.subr.mxu0 0.0
    %814 = vmatpush1.msra.mxu0 0.0
    %815 = vmatprep.subr.mxu0 0.0
    %816 = vmatpush1.msra.mxu0 0.0
    %817 = vmatprep.subr.mxu0 0.0
    %818 = vmatpush1.msra.mxu0 0.0
    %819 = vmatprep.subr.mxu0 0.0
    %820 = vmatpush1.msra.mxu0 0.0
    %821 = vmatprep.subr.mxu0 0.0
    %822 = vmatpush1.msra.mxu0 0.0
    %823 = vmatprep.subr.mxu0 0.0
    %824 = vmatpush1.msra.mxu0 0.0
    %825 = vmatprep.subr.mxu0 0.0
    %826 = vmatpush1.msra.mxu0 0.0
    %827 = vmatprep.subr.mxu0 0.0
    %828 = vmatpush1.msra.mxu0 0.0
    %829 = vmatprep.subr.mxu0 0.0
    %830 = vmatpush1.msra.mxu0 0.0
    %831 = vmatprep.subr.mxu0 0.0
    %832 = vmatpush1.msra.mxu0 0.0
    %833 = vmatprep.subr.mxu0 0.0
    %834 = vmatpush1.msra.mxu0 0.0
    %835 = vmatprep.subr.mxu0 0.0
    %836 = vmatpush1.msra.mxu0 0.0
    %837 = vmatprep.subr.mxu0 0.0
    %838 = vmatpush1.msra.mxu0 0.0
    %839 = vmatprep.subr.mxu0 0.0
    %840 = vmatpush1.msra.mxu0 0.0
    %841 = vmatprep.subr.mxu0 0.0
    %842 = vmatpush1.msra.mxu0 0.0
    %843 = vmatprep.subr.mxu0 0.0
    %844 = vmatpush1.msra.mxu0 0.0
    %845 = vmatprep.subr.mxu0 0.0
    %846 = vmatpush1.msra.mxu0 0.0
    %847 = vmatprep.subr.mxu0 0.0
    %848 = vmatpush1.msra.mxu0 0.0
    %849 = vmatprep.subr.mxu0 0.0
    %850 = vmatpush1.msra.mxu0 0.0
    %851 = vmatprep.subr.mxu0 0.0
    %852 = vmatpush1.msra.mxu0 0.0
    %853 = vmatprep.subr.mxu0 0.0
    %854 = vmatpush1.msra.mxu0 0.0
    %855 = vmatprep.subr.mxu0 0.0
    %856 = vmatpush1.msra.mxu0 0.0
    %857 = vmatprep.subr.mxu0 0.0
    %858 = vmatpush1.msra.mxu0 0.0
    %859 = vmatprep.subr.mxu0 0.0
    %860 = vmatpush1.msra.mxu0 0.0
    %861 = vmatprep.subr.mxu0 0.0
    %862 = vmatpush1.msra.mxu0 0.0
    %863 = vmatprep.subr.mxu0 0.0
    %864 = vmatpush1.msra.mxu0 0.0
    %865 = vmatprep.subr.mxu0 0.0
    %866 = vmatpush1.msra.mxu0 0.0
    %867 = vmatprep.subr.mxu0 0.0
    %868 = vmatpush1.msra.mxu0 0.0
    %869 = vmatprep.subr.mxu0 0.0
    %870 = vmatpush1.msra.mxu0 0.0
    %871 = vmatprep.subr.mxu0 0.0
    %872 = vmatpush1.msra.mxu0 0.0
    %873 = vmatprep.mubr.f32.mxu0 0.0
    %874 = vmatmul.mubr.f32.gmra.mrb[0].mxu0 %v785
    %v875 = vpop.f32.mrb[0].mxu0
    %v876 = vadd.f32 0.0, %v875
    %v877 = vpop.f32.mrb[0].mxu0
    %v878 = vadd.f32 0.0, %v877
    %879 = vmatprep.mubr.f32.mxu0 0.0
    %880 = vmatmul.mubr.f32.gmra.mrb[0].mxu0 %v788
    %v881 = vpop.f32.mrb[0].mxu0
    %v882 = vadd.f32 0.0, %v881
    %v883 = vpop.f32.mrb[0].mxu0
    %v884 = vadd.f32 0.0, %v883
    %885 = vmatprep.mubr.f32.mxu0 0.0
    %886 = vmatmul.mubr.f32.gmra.mrb[0].mxu0 %v791
    %v887 = vpop.f32.mrb[0].mxu0
    %v888 = vadd.f32 0.0, %v887
    %v889 = vpop.f32.mrb[0].mxu0
    %v890 = vadd.f32 0.0, %v889
    %891 = vmatprep.mubr.f32.mxu0 0.0
    %892 = vmatmul.mubr.f32.gmra.mrb[0].mxu0 %v794
    %v893 = vpop.f32.mrb[0].mxu0
    %v894 = vadd.f32 0.0, %v893
    %v895 = vpop.f32.mrb[0].mxu0
    %v896 = vadd.f32 0.0, %v895
    %897 = vdwg.mxu0
    %898 = vmatprep.subr.mxu0 %v807
    %899 = vmatpush1.msra.mxu0 %v804
    %900 = vmatprep.subr.mxu0 0.0
    %901 = vmatpush1.msra.mxu0 0.0
    %902 = vmatprep.subr.mxu0 0.0
    %903 = vmatpush1.msra.mxu0 0.0
    %904 = vmatprep.subr.mxu0 0.0
    %905 = vmatpush1.msra.mxu0 0.0
    %906 = vmatprep.subr.mxu0 0.0
    %907 = vmatpush1.msra.mxu0 0.0
    %908 = vmatprep.subr.mxu0 0.0
    %909 = vmatpush1.msra.mxu0 0.0
    %910 = vmatprep.subr.mxu0 0.0
    %911 = vmatpush1.msra.mxu0 0.0
    %912 = vmatprep.subr.mxu0 0.0
    %913 = vmatpush1.msra.mxu0 0.0
    %914 = vmatprep.subr.mxu0 0.0
    %915 = vmatpush1.msra.mxu0 0.0
    %916 = vmatprep.subr.mxu0 0.0
    %917 = vmatpush1.msra.mxu0 0.0
    %918 = vmatprep.subr.mxu0 0.0
    %919 = vmatpush1.msra.mxu0 0.0
    %920 = vmatprep.subr.mxu0 0.0
    %921 = vmatpush1.msra.mxu0 0.0
    %922 = vmatprep.subr.mxu0 0.0
    %923 = vmatpush1.msra.mxu0 0.0
    %924 = vmatprep.subr.mxu0 0.0
    %925 = vmatpush1.msra.mxu0 0.0
    %926 = vmatprep.subr.mxu0 0.0
    %927 = vmatpush1.msra.mxu0 0.0
    %928 = vmatprep.subr.mxu0 0.0
    %929 = vmatpush1.msra.mxu0 0.0
    %930 = vmatprep.subr.mxu0 0.0
    %931 = vmatpush1.msra.mxu0 0.0
    %932 = vmatprep.subr.mxu0 0.0
    %933 = vmatpush1.msra.mxu0 0.0
    %934 = vmatprep.subr.mxu0 0.0
    %935 = vmatpush1.msra.mxu0 0.0
    %936 = vmatprep.subr.mxu0 0.0
    %937 = vmatpush1.msra.mxu0 0.0
    %938 = vmatprep.subr.mxu0 0.0
    %939 = vmatpush1.msra.mxu0 0.0
    %940 = vmatprep.subr.mxu0 0.0
    %941 = vmatpush1.msra.mxu0 0.0
    %942 = vmatprep.subr.mxu0 0.0
    %943 = vmatpush1.msra.mxu0 0.0
    %944 = vmatprep.subr.mxu0 0.0
    %945 = vmatpush1.msra.mxu0 0.0
    %946 = vmatprep.subr.mxu0 0.0
    %947 = vmatpush1.msra.mxu0 0.0
    %948 = vmatprep.subr.mxu0 0.0
    %949 = vmatpush1.msra.mxu0 0.0
    %950 = vmatprep.subr.mxu0 0.0
    %951 = vmatpush1.msra.mxu0 0.0
    %952 = vmatprep.subr.mxu0 0.0
    %953 = vmatpush1.msra.mxu0 0.0
    %954 = vmatprep.subr.mxu0 0.0
    %955 = vmatpush1.msra.mxu0 0.0
    %956 = vmatprep.subr.mxu0 0.0
    %957 = vmatpush1.msra.mxu0 0.0
    %958 = vmatprep.subr.mxu0 0.0
    %959 = vmatpush1.msra.mxu0 0.0
    %960 = vmatprep.subr.mxu0 0.0
    %961 = vmatpush1.msra.mxu0 0.0
    %962 = vmatprep.mubr.f32.mxu0 0.0
    %963 = vmatmul.mubr.f32.gmra.mrb[0].mxu0 %v785
    %v964 = vpop.f32.mrb[0].mxu0
    %v965 = vadd.f32 0.0, %v964
    %v966 = vpop.f32.mrb[0].mxu0
    %v967 = vadd.f32 0.0, %v966
    %968 = vmatprep.mubr.f32.mxu0 0.0
    %969 = vmatmul.mubr.f32.gmra.mrb[0].mxu0 %v788
    %v970 = vpop.f32.mrb[0].mxu0
    %v971 = vadd.f32 0.0, %v970
    %v972 = vpop.f32.mrb[0].mxu0
    %v973 = vadd.f32 0.0, %v972
    %974 = vmatprep.mubr.f32.mxu0 0.0
    %975 = vmatmul.mubr.f32.gmra.mrb[0].mxu0 %v791
    %v976 = vpop.f32.mrb[0].mxu0
    %v977 = vadd.f32 0.0, %v976
    %v978 = vpop.f32.mrb[0].mxu0
    %v979 = vadd.f32 0.0, %v978
    %980 = vmatprep.mubr.f32.mxu0 0.0
    %981 = vmatmul.mubr.f32.gmra.mrb[0].mxu0 %v794
    %v982 = vpop.f32.mrb[0].mxu0
    %v983 = vadd.f32 0.0, %v982
    %v984 = vpop.f32.mrb[0].mxu0
    %v985 = vadd.f32 0.0, %v984
    %986 = vdwg.mxu0
    %v987 = vmul.f32 %v303, %v876
    %v988 = vmul.f32 %v305, %v878
    %v989 = vmul.f32 %v356, %v965
    %v990 = vmul.f32 %v358, %v967
    %v991 = vmul.f32 %v307, %v882
    %v992 = vmul.f32 %v309, %v884
    %v993 = vmul.f32 %v360, %v971
    %v994 = vmul.f32 %v362, %v973
    %v995 = vmul.f32 %v313, %v888
    %v996 = vmul.f32 %v315, %v890
    %v997 = vmul.f32 %v366, %v977
    %v998 = vmul.f32 %v368, %v979
    %v999 = vmul.f32 %v317, %v894
    %v1000 = vmul.f32 %v319, %v896
    %v1001 = vmul.f32 %v370, %v983
    %v1002 = vmul.f32 %v372, %v985
    %v1003 = vld [vmem:[#allocation2 + $0x1c0] sm:$0xff]
    %v1004 = vld [vmem:[#allocation2 + $0x1e0] sm:$0xff]
    %v1005 = vld [vmem:[#allocation2 + $0x200] sm:$0xff]
    %v1006 = vld [vmem:[#allocation2 + $0x220] sm:$0xff]
    %v1007 = vpack.c.bf16 %v1004, %v1003
    %v1008 = vpack.c.bf16 %v991, %v987
    %v1009 = vpack.c.bf16 %v992, %v988
    %v1010 = vpack.c.bf16 %v993, %v989
    %v1011 = vpack.c.bf16 %v994, %v990
    %v1012 = vpack.c.bf16 %v999, %v995
    %v1013 = vpack.c.bf16 %v1000, %v996
    %v1014 = vpack.c.bf16 %v1001, %v997
    %v1015 = vpack.c.bf16 %v1002, %v998
    %1017 = vset.pattern.permute.xlu0 0
    %1018 = vperm.xlu0 %1017, %v1005
    %v1019 = vpop.permute.xlu0 %1018
    %1022 = vset.pattern.permute.xlu0 0
    %1023 = vperm.xlu0 %1022, %v1006
    %v1024 = vpop.permute.xlu0 %1023
    %v1027 = vsel %vm555, %v1007, 0
    %1029 = vmatprep.subr.bf16.mxu0 %v1009
    %1030 = vmatpush1.bf16.msra.mxu0 %v1008
    %1031 = vmatprep.subr.bf16.mxu0 %v1013
    %1032 = vmatpush1.bf16.msra.mxu0 %v1012
    %1033 = vmatprep.subr.bf16.mxu0 0
    %1034 = vmatpush1.bf16.msra.mxu0 0
    %1035 = vmatprep.subr.bf16.mxu0 0
    %1036 = vmatpush1.bf16.msra.mxu0 0
    %1037 = vmatprep.subr.bf16.mxu0 0
    %1038 = vmatpush1.bf16.msra.mxu0 0
    %1039 = vmatprep.subr.bf16.mxu0 0
    %1040 = vmatpush1.bf16.msra.mxu0 0
    %1041 = vmatprep.subr.bf16.mxu0 0
    %1042 = vmatpush1.bf16.msra.mxu0 0
    %1043 = vmatprep.subr.bf16.mxu0 0
    %1044 = vmatpush1.bf16.msra.mxu0 0
    %1045 = vmatprep.subr.bf16.mxu0 0
    %1046 = vmatpush1.bf16.msra.mxu0 0
    %1047 = vmatprep.subr.bf16.mxu0 0
    %1048 = vmatpush1.bf16.msra.mxu0 0
    %1049 = vmatprep.subr.bf16.mxu0 0
    %1050 = vmatpush1.bf16.msra.mxu0 0
    %1051 = vmatprep.subr.bf16.mxu0 0
    %1052 = vmatpush1.bf16.msra.mxu0 0
    %1053 = vmatprep.subr.bf16.mxu0 0
    %1054 = vmatpush1.bf16.msra.mxu0 0
    %1055 = vmatprep.subr.bf16.mxu0 0
    %1056 = vmatpush1.bf16.msra.mxu0 0
    %1057 = vmatprep.subr.bf16.mxu0 0
    %1058 = vmatpush1.bf16.msra.mxu0 0
    %1059 = vmatprep.subr.bf16.mxu0 0
    %1060 = vmatpush1.bf16.msra.mxu0 0
    %1061 = vmatprep.mubr.bf16.mxu0 0
    %1062 = vmatmul.mubr.bf16.gmra.mrb[0].mxu0 %v1027
    %v1063 = vpop.f32.mrb[0].mxu0
    %v1064 = vadd.f32 %v1019, %v1063
    %v1065 = vpop.f32.mrb[0].mxu0
    %v1066 = vadd.f32 %v1019, %v1065
    %v1067 = vpop.f32.mrb[0].mxu0
    %v1068 = vadd.f32 %v1024, %v1067
    %v1069 = vpop.f32.mrb[0].mxu0
    %v1070 = vadd.f32 %v1024, %v1069
    %1071 = vdwg.mxu0
    %1072 = vmatprep.subr.bf16.mxu0 %v1011
    %1073 = vmatpush1.bf16.msra.mxu0 %v1010
    %1074 = vmatprep.subr.bf16.mxu0 %v1015
    %1075 = vmatpush1.bf16.msra.mxu0 %v1014
    %1076 = vmatprep.subr.bf16.mxu0 0
    %1077 = vmatpush1.bf16.msra.mxu0 0
    %1078 = vmatprep.subr.bf16.mxu0 0
    %1079 = vmatpush1.bf16.msra.mxu0 0
    %1080 = vmatprep.subr.bf16.mxu0 0
    %1081 = vmatpush1.bf16.msra.mxu0 0
    %1082 = vmatprep.subr.bf16.mxu0 0
    %1083 = vmatpush1.bf16.msra.mxu0 0
    %1084 = vmatprep.subr.bf16.mxu0 0
    %1085 = vmatpush1.bf16.msra.mxu0 0
    %1086 = vmatprep.subr.bf16.mxu0 0
    %1087 = vmatpush1.bf16.msra.mxu0 0
    %1088 = vmatprep.subr.bf16.mxu0 0
    %1089 = vmatpush1.bf16.msra.mxu0 0
    %1090 = vmatprep.subr.bf16.mxu0 0
    %1091 = vmatpush1.bf16.msra.mxu0 0
    %1092 = vmatprep.subr.bf16.mxu0 0
    %1093 = vmatpush1.bf16.msra.mxu0 0
    %1094 = vmatprep.subr.bf16.mxu0 0
    %1095 = vmatpush1.bf16.msra.mxu0 0
    %1096 = vmatprep.subr.bf16.mxu0 0
    %1097 = vmatpush1.bf16.msra.mxu0 0
    %1098 = vmatprep.subr.bf16.mxu0 0
    %1099 = vmatpush1.bf16.msra.mxu0 0
    %1100 = vmatprep.subr.bf16.mxu0 0
    %1101 = vmatpush1.bf16.msra.mxu0 0
    %1102 = vmatprep.subr.bf16.mxu0 0
    %1103 = vmatpush1.bf16.msra.mxu0 0
    %1104 = vmatprep.mubr.bf16.mxu0 0
    %1105 = vmatmul.mubr.bf16.gmra.mrb[0].mxu0 %v1027
    %v1106 = vpop.f32.mrb[0].mxu0
    %v1107 = vadd.f32 %v1019, %v1106
    %v1108 = vpop.f32.mrb[0].mxu0
    %v1109 = vadd.f32 %v1019, %v1108
    %v1110 = vpop.f32.mrb[0].mxu0
    %v1111 = vadd.f32 %v1024, %v1110
    %v1112 = vpop.f32.mrb[0].mxu0
    %v1113 = vadd.f32 %v1024, %v1112
    %1114 = vdwg.mxu0
    %1115 = vst [vmem:[%s2] sm:$0xff] %v1064
    %1116 = vst [vmem:[%s2 + $0x8] sm:$0xff] %v1066
    %1117 = vst [vmem:[%s2 + $0x10] sm:$0xff] %v1107
    %1118 = vst [vmem:[%s2 + $0x18] sm:$0xff] %v1109
    %1119 = vst [vmem:[%s2 + $0x20] sm:$0xff] %v1068
    %1120 = vst [vmem:[%s2 + $0x28] sm:$0xff] %v1070
    %1121 = vst [vmem:[%s2 + $0x30] sm:$0xff] %v1111
    %1122 = vst [vmem:[%s2 + $0x38] sm:$0xff] %v1113
    // Predicated region
    $region14: #{pce_forward.1} parent=1 // pred_check
      _
    $region15: #{pce_forward.1} parent=1 // pred_check_branch
      %1124 = sbr.rel (0) target = $region17
    $region16: #{pce_forward.1} parent=1 // pred_region
      _
    $region17: #{pce_forward.1} parent=1 // pred_fallthru
      _
    // Predicated region
    $region18: #{pce_forward.1} parent=1 // pred_check
      _
    $region19: #{pce_forward.1} parent=1 // pred_check_branch
      %1126 = sbr.rel (0) target = $region21
    $region20: #{pce_forward.1} parent=1 // pred_region
      _
    $region21: #{pce_forward.1} parent=1 // pred_fallthru
      _
    %1127 = vsyncpa [#allocation3], 1

</llo_original>
